<compile_context>
chip_gen: v7x
topology: tpu7x:2x2x1
jax: 0.10.0
libtpu: 0.0.40
codegen_flags: <defaults>
</compile_context>

<pallas_src>
import jax
import jax.numpy as jnp
from jax.experimental import pallas as pl
from jax.experimental.pallas import tpu as pltpu

EPS = 1e-10    # matches AttentivePoolLayer eps
BN_EPS = 1e-5  # nn.BatchNorm1d default


def attentive_pool_kernel(len_ref,              # scalar-prefetch: lengths (B,) int32 in SMEM
                          x_ref,                # (1, C, T)  float32
                          w1x_ref,              # (A, C)     bf16
                          w1ms_ref,             # (A, 2C)    bf16  (merged [mean|std] blocks)
                          b1_ref,               # (A, 1)     f32
                          bns_ref, bnb_ref,     # (A, 1)     f32   folded BatchNorm1d (eval)
                          w2_ref,               # (C, A)     bf16  attention conv (k=1)
                          b2_ref,               # (C, 1)     f32
                          out_ref):             # (1, 1, 2C) f32, lane-dense
    b = pl.program_id(0)
    length = len_ref[b]                                    # int32 scalar, pre-clamped to [0, T]

    x = x_ref[0]                                           # (C, T) float32
    C, T = x.shape

    # --- normalization factor from the scalar length (scalar unit, no vector reduce) ---
    n = jnp.maximum(length, 1)                             # guard length == 0
    inv_n = 1.0 / n.astype(jnp.float32)

    # --- time masks from length (lens_to_mask) ---
    mask_row = jax.lax.broadcasted_iota(jnp.int32, (1, T), 1) < length              # (1, T) bool
    mask_col = (jax.lax.broadcasted_iota(jnp.int32, (T, 1), 0) < length
                ).astype(jnp.float32)                                               # (T, 1) f32

    # --- masked mean / std over time, one-pass moments on the MXU ---
    sum_x = jnp.dot(x, mask_col, preferred_element_type=jnp.float32)                # (C, 1)
    sum_x2 = jnp.dot(x * x, mask_col, preferred_element_type=jnp.float32)           # (C, 1)
    mean = sum_x * inv_n
    var = sum_x2 * inv_n - mean * mean
    std = jnp.sqrt(jnp.maximum(var, EPS))                                           # (C, 1)

    # --- attention layer: TdnnModule(3C -> A) -> Tanh -> Conv1d(A -> C), all k=1 ---
    # mean/std are constant over T, so their contribution collapses to an (A,1) bias.
    x_bf = x.astype(jnp.bfloat16)
    ms_bf = jnp.concatenate([mean, std], axis=0).astype(jnp.bfloat16)               # (2C, 1)
    bias1 = (jnp.dot(w1ms_ref[...], ms_bf, preferred_element_type=jnp.float32)
             + b1_ref[...])                                                         # (A, 1)
    h = jnp.dot(w1x_ref[...], x_bf, preferred_element_type=jnp.float32) + bias1     # (A, T)
    h = jnp.maximum(h, 0.0)                                                         # ReLU
    h = h * bns_ref[...] + bnb_ref[...]                                             # BN (eval)
    h = jnp.tanh(h)
    attn = (jnp.dot(w2_ref[...], h.astype(jnp.bfloat16),
                    preferred_element_type=jnp.float32) + b2_ref[...])              # (C, T)

    # --- masked softmax over time; normalization folded into the final reductions ---
    attn = jnp.where(mask_row, attn, -jnp.inf)
    amax = jnp.maximum(jnp.max(attn, axis=1, keepdims=True), -1e30)   # finite even if all masked
    e = jnp.exp(attn - amax)                                          # (C, T), 0 at masked frames
    s = jnp.maximum(jnp.sum(e, axis=1, keepdims=True), 1e-30)         # (C, 1)
    inv_s = pl.reciprocal(s, approx=False)                            # C divides, not C*T

    # --- attention-weighted statistics, one-pass moments ---
    xe = e * x                                                        # (C, T)
    mu = jnp.sum(xe, axis=1, keepdims=True) * inv_s                   # (C, 1)
    ex2 = jnp.sum(xe * x, axis=1, keepdims=True) * inv_s              # (C, 1)
    sg = jnp.sqrt(jnp.maximum(ex2 - mu * mu, EPS))                    # (C, 1)

    # lane-dense store: (2C, 1) column -> (1, 2C) row
    stats = jnp.concatenate([mu, sg], axis=0)                         # (2C, 1)
    out_ref[0] = jnp.transpose(stats, (1, 0))                         # (1, 2C)


@jax.jit
def attentive_pool(x, lengths, w1, b1, bn_scale, bn_shift, w2, b2):
    """x: (B, C, T); lengths: (B,) int; w1: (A, 3C); returns (B, 2C, 1) float32."""
    B, C, T = x.shape
    A = w1.shape[0]

    # Lane-dense time axis: pad T to a multiple of 128; the length mask keeps results exact.
    T_pad = ((T + 127) // 128) * 128
    if T_pad != T:
        x = jnp.pad(x, ((0, 0), (0, 0), (0, T_pad - T)))
    lengths = jnp.minimum(lengths.astype(jnp.int32), T)   # clamp so padded frames never count

    # Split the TDNN conv weight over its [x | mean,std] input blocks and cast the big
    # matmul operands to bf16 host-side (f32 accumulation happens on the MXU).
    w1x = w1[:, :C].astype(jnp.bfloat16)                  # (A, C)
    w1ms = w1[:, C:].astype(jnp.bfloat16)                 # (A, 2C)
    w2b = w2.astype(jnp.bfloat16)                         # (C, A)

    out = pl.pallas_call(
        attentive_pool_kernel,
        out_shape=jax.ShapeDtypeStruct((B, 1, 2 * C), jnp.float32),
        grid_spec=pltpu.PrefetchScalarGridSpec(
            num_scalar_prefetch=1,
            grid=(B,),
            in_specs=[
                pl.BlockSpec((1, C, T_pad), lambda b, lens: (b, 0, 0)),   # x
                pl.BlockSpec((A, C), lambda b, lens: (0, 0)),             # w1x  (bf16)
                pl.BlockSpec((A, 2 * C), lambda b, lens: (0, 0)),         # w1ms (bf16)
                pl.BlockSpec((A, 1), lambda b, lens: (0, 0)),             # b1
                pl.BlockSpec((A, 1), lambda b, lens: (0, 0)),             # bn scale
                pl.BlockSpec((A, 1), lambda b, lens: (0, 0)),             # bn shift
                pl.BlockSpec((C, A), lambda b, lens: (0, 0)),             # w2   (bf16)
                pl.BlockSpec((C, 1), lambda b, lens: (0, 0)),             # b2
            ],
            out_specs=pl.BlockSpec((1, 1, 2 * C), lambda b, lens: (b, 0, 0)),
        ),
        compiler_params=pltpu.CompilerParams(
            dimension_semantics=("parallel",),          # batch steps independent (v7x dual-TC)
            vmem_limit_bytes=64 * 1024 * 1024),         # headroom for real-size full-T tiles
    )(lengths, x, w1x, w1ms, b1, bn_scale, bn_shift, w2b, b2)

    # (B, 1, 2C) -> (B, 2C, 1) to match the PyTorch module's output layout.
    return jnp.transpose(out, (0, 2, 1))


def reference_forward(x, lengths, w1, b1, bn_scale, bn_shift, w2, b2):
    """Pure-JAX f32 reference mirroring the PyTorch module (eval-mode BN, two-pass stats)."""
    B, C, T = x.shape
    mask = (jnp.arange(T)[None, None, :] < lengths[:, None, None]).astype(jnp.float32)
    num = jnp.sum(mask, axis=2, keepdims=True)
    m = mask / num
    mean = jnp.sum(m * x, axis=2)
    std = jnp.sqrt(jnp.maximum(jnp.sum(m * (x - mean[:, :, None]) ** 2, axis=2), EPS))
    attn_in = jnp.concatenate(
        [x,
         jnp.broadcast_to(mean[:, :, None], (B, C, T)),
         jnp.broadcast_to(std[:, :, None], (B, C, T))], axis=1)
    h = jnp.einsum('ac,bct->bat', w1, attn_in) + b1[None]
    h = jnp.maximum(h, 0.0)
    h = h * bn_scale[None] + bn_shift[None]
    h = jnp.tanh(h)
    attn = jnp.einsum('ca,bat->bct', w2, h) + b2[None]
    attn = jnp.where(mask > 0, attn, -jnp.inf)
    alpha = jax.nn.softmax(attn, axis=2)
    mu = jnp.sum(alpha * x, axis=2)
    sg = jnp.sqrt(jnp.maximum(jnp.sum(alpha * (x - mu[:, :, None]) ** 2, axis=2), EPS))
    return jnp.concatenate([mu, sg], axis=1)[:, :, None]


if __name__ == "__main__":
    B, C, A, T = 2, 16, 32, 16   # batch, inp_filters, attention_channels, time

    key = jax.random.PRNGKey(0)
    k_x, k_w1, k_b1, k_w2, k_b2 = jax.random.split(key, 5)

    x = jax.random.normal(k_x, (B, C, T), dtype=jnp.float32)
    lengths = jnp.array([T, 11], dtype=jnp.int32)

    # Conv1d-style deterministic init (uniform with bound 1/sqrt(fan_in))
    bound1 = 1.0 / (3 * C) ** 0.5
    w1 = jax.random.uniform(k_w1, (A, 3 * C), jnp.float32, -bound1, bound1)
    b1 = jax.random.uniform(k_b1, (A, 1), jnp.float32, -bound1, bound1)
    bound2 = 1.0 / A ** 0.5
    w2 = jax.random.uniform(k_w2, (C, A), jnp.float32, -bound2, bound2)
    b2 = jax.random.uniform(k_b2, (C, 1), jnp.float32, -bound2, bound2)

    # BatchNorm1d (eval): gamma=1, beta=0, running_mean=0, running_var=1 -> folded affine
    gamma = jnp.ones((A, 1), jnp.float32)
    beta = jnp.zeros((A, 1), jnp.float32)
    running_mean = jnp.zeros((A, 1), jnp.float32)
    running_var = jnp.ones((A, 1), jnp.float32)
    bn_scale = gamma / jnp.sqrt(running_var + BN_EPS)
    bn_shift = beta - running_mean * bn_scale

    out = attentive_pool(x, lengths, w1, b1, bn_scale, bn_shift, w2, b2)
    out = jax.block_until_ready(out)

    ref = reference_forward(x, lengths, w1, b1, bn_scale, bn_shift, w2, b2)
    assert out.shape == (B, 2 * C, 1), out.shape
    # Tolerance relaxed vs. the f32 reference: the two big matmuls now use bf16 operands
    # (f32 accumulation), which legitimately perturbs the attention logits by ~1e-3.
    assert jnp.allclose(out, ref, atol=2e-2, rtol=2e-2), float(jnp.max(jnp.abs(out - ref)))

    print("KERNEL_OK")
</pallas_src>

<mosaic_0001>
module attributes {stable_mosaic.version = 11 : i64} {
  func.func @attentive_pool_kernel(%arg0: i32, %arg1: memref<2xi32, #tpu.memory_space<smem>>, %arg2: memref<1x16x128xf32, #tpu.memory_space<vmem>>, %arg3: memref<32x16xbf16, #tpu.memory_space<vmem>>, %arg4: memref<32x32xbf16, #tpu.memory_space<vmem>>, %arg5: memref<32x1xf32, #tpu.memory_space<vmem>>, %arg6: memref<32x1xf32, #tpu.memory_space<vmem>>, %arg7: memref<32x1xf32, #tpu.memory_space<vmem>>, %arg8: memref<16x32xbf16, #tpu.memory_space<vmem>>, %arg9: memref<16x1xf32, #tpu.memory_space<vmem>>, %arg10: memref<1x1x32xf32, #tpu.memory_space<vmem>>) attributes {dimension_semantics = [#tpu.dimension_semantics<parallel>], iteration_bounds = array<i64: 2>, scalar_prefetch = 1 : i64, scratch_operands = 0 : i64, tpu.core_type = #tpu.core_type<tc>, window_params = [{transform_indices = @transform_0, window_bounds = array<i64: 1, 16, 128>}, {pipeline_mode = #tpu.pipeline_mode<synchronous>, transform_indices = @transform_1, window_bounds = array<i64: 32, 16>}, {pipeline_mode = #tpu.pipeline_mode<synchronous>, transform_indices = @transform_2, window_bounds = array<i64: 32, 32>}, {pipeline_mode = #tpu.pipeline_mode<synchronous>, transform_indices = @transform_3, window_bounds = array<i64: 32, 1>}, {pipeline_mode = #tpu.pipeline_mode<synchronous>, transform_indices = @transform_4, window_bounds = array<i64: 32, 1>}, {pipeline_mode = #tpu.pipeline_mode<synchronous>, transform_indices = @transform_5, window_bounds = array<i64: 32, 1>}, {pipeline_mode = #tpu.pipeline_mode<synchronous>, transform_indices = @transform_6, window_bounds = array<i64: 16, 32>}, {pipeline_mode = #tpu.pipeline_mode<synchronous>, transform_indices = @transform_7, window_bounds = array<i64: 16, 1>}, {transform_indices = @transform_8, window_bounds = array<i64: 1, 1, 32>}]} {
    %0 = arith.index_cast %arg0 : i32 to index
    %1 = memref.load %arg1[%0] : memref<2xi32, #tpu.memory_space<smem>>
    %c0 = arith.constant 0 : index
    %c0_0 = arith.constant 0 : index
    %c0_1 = arith.constant 0 : index
    %2 = vector.load %arg2[%c0, %c0_0, %c0_1] : memref<1x16x128xf32, #tpu.memory_space<vmem>>, vector<1x16x128xf32>
    %3 = vector.shape_cast %2 : vector<1x16x128xf32> to vector<16x128xf32>
    %c1_i32 = arith.constant 1 : i32
    %4 = arith.maxsi %1, %c1_i32 : i32
    %5 = arith.sitofp %4 : i32 to f32
    %cst = arith.constant 1.000000e+00 : f32
    %6 = arith.divf %cst, %5 : f32
    %7 = tpu.iota {dimensions = array<i32: 1>} : vector<1x128xi32>
    %8 = vector.broadcast %1 : i32 to vector<1x128xi32>
    %9 = arith.cmpi slt, %7, %8 : vector<1x128xi32>
    %10 = tpu.iota {dimensions = array<i32: 0>} : vector<128x1xi32>
    %11 = vector.broadcast %1 : i32 to vector<128x1xi32>
    %12 = arith.cmpi slt, %10, %11 : vector<128x1xi32>
    %13 = arith.extui %12 : vector<128x1xi1> to vector<128x1xi32>
    %14 = arith.sitofp %13 : vector<128x1xi32> to vector<128x1xf32>
    %cst_2 = arith.constant dense<0.000000e+00> : vector<16x1xf32>
    %15 = tpu.matmul %3, %14, %cst_2 {dimension_numbers = #tpu.dot_dimension_numbers<[1], [0], [0], [1], [0, 0, 1, 1], [], []>} : vector<16x128xf32>, vector<128x1xf32>, vector<16x1xf32> -> vector<16x1xf32>
    %16 = arith.mulf %3, %3 : vector<16x128xf32>
    %cst_3 = arith.constant dense<0.000000e+00> : vector<16x1xf32>
    %17 = tpu.matmul %16, %14, %cst_3 {dimension_numbers = #tpu.dot_dimension_numbers<[1], [0], [0], [1], [0, 0, 1, 1], [], []>} : vector<16x128xf32>, vector<128x1xf32>, vector<16x1xf32> -> vector<16x1xf32>
    %18 = vector.broadcast %6 : f32 to vector<16x1xf32>
    %19 = arith.mulf %15, %18 : vector<16x1xf32>
    %20 = vector.broadcast %6 : f32 to vector<16x1xf32>
    %21 = arith.mulf %17, %20 : vector<16x1xf32>
    %22 = arith.mulf %19, %19 : vector<16x1xf32>
    %23 = arith.subf %21, %22 : vector<16x1xf32>
    %cst_4 = arith.constant 1.000000e-10 : f32
    %24 = vector.broadcast %cst_4 : f32 to vector<16x1xf32>
    %25 = arith.maximumf %23, %24 : vector<16x1xf32>
    %26 = math.sqrt %25 : vector<16x1xf32>
    %27 = arith.truncf %3 : vector<16x128xf32> to vector<16x128xbf16>
    %28 = tpu.concatenate %19, %26 in 0 : vector<16x1xf32>, vector<16x1xf32> -> vector<32x1xf32>
    %29 = arith.truncf %28 : vector<32x1xf32> to vector<32x1xbf16>
    %c0_5 = arith.constant 0 : index
    %c0_6 = arith.constant 0 : index
    %30 = vector.load %arg4[%c0_5, %c0_6] : memref<32x32xbf16, #tpu.memory_space<vmem>>, vector<32x32xbf16>
    %cst_7 = arith.constant dense<0.000000e+00> : vector<32x1xf32>
    %31 = tpu.matmul %30, %29, %cst_7 {dimension_numbers = #tpu.dot_dimension_numbers<[1], [0], [0], [1], [0, 0, 1, 1], [], []>} : vector<32x32xbf16>, vector<32x1xbf16>, vector<32x1xf32> -> vector<32x1xf32>
    %c0_8 = arith.constant 0 : index
    %c0_9 = arith.constant 0 : index
    %32 = vector.load %arg5[%c0_8, %c0_9] : memref<32x1xf32, #tpu.memory_space<vmem>>, vector<32x1xf32>
    %33 = arith.addf %31, %32 : vector<32x1xf32>
    %c0_10 = arith.constant 0 : index
    %c0_11 = arith.constant 0 : index
    %34 = vector.load %arg3[%c0_10, %c0_11] : memref<32x16xbf16, #tpu.memory_space<vmem>>, vector<32x16xbf16>
    %cst_12 = arith.constant dense<0.000000e+00> : vector<32x128xf32>
    %35 = tpu.matmul %34, %27, %cst_12 {dimension_numbers = #tpu.dot_dimension_numbers<[1], [0], [0], [1], [0, 0, 1, 1], [], []>} : vector<32x16xbf16>, vector<16x128xbf16>, vector<32x128xf32> -> vector<32x128xf32>
    %36 = vector.broadcast %33 : vector<32x1xf32> to vector<32x128xf32>
    %37 = arith.addf %35, %36 : vector<32x128xf32>
    %cst_13 = arith.constant 0.000000e+00 : f32
    %38 = vector.broadcast %cst_13 : f32 to vector<32x128xf32>
    %39 = arith.maximumf %37, %38 : vector<32x128xf32>
    %c0_14 = arith.constant 0 : index
    %c0_15 = arith.constant 0 : index
    %40 = vector.load %arg6[%c0_14, %c0_15] : memref<32x1xf32, #tpu.memory_space<vmem>>, vector<32x1xf32>
    %41 = vector.broadcast %40 : vector<32x1xf32> to vector<32x128xf32>
    %42 = arith.mulf %39, %41 : vector<32x128xf32>
    %c0_16 = arith.constant 0 : index
    %c0_17 = arith.constant 0 : index
    %43 = vector.load %arg7[%c0_16, %c0_17] : memref<32x1xf32, #tpu.memory_space<vmem>>, vector<32x1xf32>
    %44 = vector.broadcast %43 : vector<32x1xf32> to vector<32x128xf32>
    %45 = arith.addf %42, %44 : vector<32x128xf32>
    %46 = math.tanh %45 : vector<32x128xf32>
    %c0_18 = arith.constant 0 : index
    %c0_19 = arith.constant 0 : index
    %47 = vector.load %arg8[%c0_18, %c0_19] : memref<16x32xbf16, #tpu.memory_space<vmem>>, vector<16x32xbf16>
    %48 = arith.truncf %46 : vector<32x128xf32> to vector<32x128xbf16>
    %cst_20 = arith.constant dense<0.000000e+00> : vector<16x128xf32>
    %49 = tpu.matmul %47, %48, %cst_20 {dimension_numbers = #tpu.dot_dimension_numbers<[1], [0], [0], [1], [0, 0, 1, 1], [], []>} : vector<16x32xbf16>, vector<32x128xbf16>, vector<16x128xf32> -> vector<16x128xf32>
    %c0_21 = arith.constant 0 : index
    %c0_22 = arith.constant 0 : index
    %50 = vector.load %arg9[%c0_21, %c0_22] : memref<16x1xf32, #tpu.memory_space<vmem>>, vector<16x1xf32>
    %51 = vector.broadcast %50 : vector<16x1xf32> to vector<16x128xf32>
    %52 = arith.addf %49, %51 : vector<16x128xf32>
    %cst_23 = arith.constant 0xFF800000 : f32
    %53 = vector.shape_cast %9 : vector<1x128xi1> to vector<1x128xi1>
    %54 = vector.broadcast %53 : vector<1x128xi1> to vector<16x128xi1>
    %55 = vector.broadcast %cst_23 : f32 to vector<16x128xf32>
    %56 = arith.select %54, %52, %55 : vector<16x128xi1>, vector<16x128xf32>
    %cst_24 = arith.constant dense<0xFF800000> : vector<16xf32>
    %57 = vector.multi_reduction <maximumf>, %56, %cst_24 [1] : vector<16x128xf32> to vector<16xf32>
    %58 = vector.shape_cast %57 : vector<16xf32> to vector<16x1xf32>
    %cst_25 = arith.constant -1.000000e+30 : f32
    %59 = vector.broadcast %cst_25 : f32 to vector<16x1xf32>
    %60 = arith.maximumf %58, %59 : vector<16x1xf32>
    %61 = vector.broadcast %60 : vector<16x1xf32> to vector<16x128xf32>
    %62 = arith.subf %56, %61 : vector<16x128xf32>
    %63 = math.exp %62 : vector<16x128xf32>
    %cst_26 = arith.constant dense<0.000000e+00> : vector<16xf32>
    %64 = vector.multi_reduction <add>, %63, %cst_26 [1] : vector<16x128xf32> to vector<16xf32>
    %65 = vector.shape_cast %64 : vector<16xf32> to vector<16x1xf32>
    %cst_27 = arith.constant 1.000000e-30 : f32
    %66 = vector.broadcast %cst_27 : f32 to vector<16x1xf32>
    %67 = arith.maximumf %65, %66 : vector<16x1xf32>
    %68 = tpu.reciprocal %67 : vector<16x1xf32> -> vector<16x1xf32>
    %69 = arith.mulf %63, %3 : vector<16x128xf32>
    %cst_28 = arith.constant dense<0.000000e+00> : vector<16xf32>
    %70 = vector.multi_reduction <add>, %69, %cst_28 [1] : vector<16x128xf32> to vector<16xf32>
    %71 = vector.shape_cast %70 : vector<16xf32> to vector<16x1xf32>
    %72 = arith.mulf %71, %68 : vector<16x1xf32>
    %73 = arith.mulf %69, %3 : vector<16x128xf32>
    %cst_29 = arith.constant dense<0.000000e+00> : vector<16xf32>
    %74 = vector.multi_reduction <add>, %73, %cst_29 [1] : vector<16x128xf32> to vector<16xf32>
    %75 = vector.shape_cast %74 : vector<16xf32> to vector<16x1xf32>
    %76 = arith.mulf %75, %68 : vector<16x1xf32>
    %77 = arith.mulf %72, %72 : vector<16x1xf32>
    %78 = arith.subf %76, %77 : vector<16x1xf32>
    %cst_30 = arith.constant 1.000000e-10 : f32
    %79 = vector.broadcast %cst_30 : f32 to vector<16x1xf32>
    %80 = arith.maximumf %78, %79 : vector<16x1xf32>
    %81 = math.sqrt %80 : vector<16x1xf32>
    %82 = tpu.concatenate %72, %81 in 0 : vector<16x1xf32>, vector<16x1xf32> -> vector<32x1xf32>
    %83 = tpu.transpose %82, [1, 0] : vector<32x1xf32> -> vector<1x32xf32>
    %c0_31 = arith.constant 0 : index
    %c0_32 = arith.constant 0 : index
    %c0_33 = arith.constant 0 : index
    %84 = vector.load %arg10[%c0_31, %c0_32, %c0_33] : memref<1x1x32xf32, #tpu.memory_space<vmem>>, vector<1x1x32xf32>
    %85 = vector.shape_cast %84 : vector<1x1x32xf32> to vector<1x32xf32>
    %86 = vector.shape_cast %83 : vector<1x32xf32> to vector<1x1x32xf32>
    tpu.vector_store %arg10[%c0_31, %c0_32, %c0_33], %86 {strides = array<i32>} : memref<1x1x32xf32, #tpu.memory_space<vmem>>, vector<1x1x32xf32>,
    return
  }
  func.func @transform_0(%arg0: i32, %arg1: memref<2xi32, #tpu.memory_space<smem>>) -> (i32, i32, i32) {
    %c0_i32 = arith.constant 0 : i32
    %c0_i32_0 = arith.constant 0 : i32
    %c0_i32_1 = arith.constant 0 : i32
    return %arg0, %c0_i32, %c0_i32_0 : i32, i32, i32
  }
  func.func @transform_1(%arg0: i32, %arg1: memref<2xi32, #tpu.memory_space<smem>>) -> (i32, i32) {
    %c0_i32 = arith.constant 0 : i32
    %c0_i32_0 = arith.constant 0 : i32
    %c0_i32_1 = arith.constant 0 : i32
    return %c0_i32, %c0_i32_0 : i32, i32
  }
  func.func @transform_2(%arg0: i32, %arg1: memref<2xi32, #tpu.memory_space<smem>>) -> (i32, i32) {
    %c0_i32 = arith.constant 0 : i32
    %c0_i32_0 = arith.constant 0 : i32
    %c0_i32_1 = arith.constant 0 : i32
    return %c0_i32, %c0_i32_0 : i32, i32
  }
  func.func @transform_3(%arg0: i32, %arg1: memref<2xi32, #tpu.memory_space<smem>>) -> (i32, i32) {
    %c0_i32 = arith.constant 0 : i32
    %c0_i32_0 = arith.constant 0 : i32
    %c0_i32_1 = arith.constant 0 : i32
    return %c0_i32, %c0_i32_0 : i32, i32
  }
  func.func @transform_4(%arg0: i32, %arg1: memref<2xi32, #tpu.memory_space<smem>>) -> (i32, i32) {
    %c0_i32 = arith.constant 0 : i32
    %c0_i32_0 = arith.constant 0 : i32
    %c0_i32_1 = arith.constant 0 : i32
    return %c0_i32, %c0_i32_0 : i32, i32
  }
  func.func @transform_5(%arg0: i32, %arg1: memref<2xi32, #tpu.memory_space<smem>>) -> (i32, i32) {
    %c0_i32 = arith.constant 0 : i32
    %c0_i32_0 = arith.constant 0 : i32
    %c0_i32_1 = arith.constant 0 : i32
    return %c0_i32, %c0_i32_0 : i32, i32
  }
  func.func @transform_6(%arg0: i32, %arg1: memref<2xi32, #tpu.memory_space<smem>>) -> (i32, i32) {
    %c0_i32 = arith.constant 0 : i32
    %c0_i32_0 = arith.constant 0 : i32
    %c0_i32_1 = arith.constant 0 : i32
    return %c0_i32, %c0_i32_0 : i32, i32
  }
  func.func @transform_7(%arg0: i32, %arg1: memref<2xi32, #tpu.memory_space<smem>>) -> (i32, i32) {
    %c0_i32 = arith.constant 0 : i32
    %c0_i32_0 = arith.constant 0 : i32
    %c0_i32_1 = arith.constant 0 : i32
    return %c0_i32, %c0_i32_0 : i32, i32
  }
  func.func @transform_8(%arg0: i32, %arg1: memref<2xi32, #tpu.memory_space<smem>>) -> (i32, i32, i32) {
    %c0_i32 = arith.constant 0 : i32
    %c0_i32_0 = arith.constant 0 : i32
    %c0_i32_1 = arith.constant 0 : i32
    return %arg0, %c0_i32, %c0_i32_0 : i32, i32, i32
  }
}

</mosaic_0001>

<llo_original>
// kernel: attentive_pool.1
$region0: #{attentive_pool.1}
  #allocation0 [shape = 'u32[]', space=smem, size = 0x4, offset = 0x4, fixed_abs, tag = 'smem constant byte address 0x4 - core index']
  #allocation1 [shape = 'u32[144,128]{1,0:T(1,128)}', space=vmem, size = 0x12000, scoped, tag = 'internal scratch']
  #allocation2 [shape = 's32[1]{0}', space=sflag, size = 0x4, scoped, tag = 'scoped memory for attentive_pool.1']
  #allocation3 [shape = 'u8[512]{0}', space=smem, size = 0x200, scoped, tag = 'prefetched SMEM operand 0']
  %s0 = inlined_call_operand.hbm [shape: s32[2], index: 0, kind: input, shape index: {}]
  %s1 = inlined_call_operand.hbm [shape: f32[2,16,128], index: 1, kind: input, shape index: {}]
  %s2 = inlined_call_operand.hbm [shape: bf16[32,16], index: 2, kind: input, shape index: {}]
  %s3 = inlined_call_operand.hbm [shape: bf16[32,32], index: 3, kind: input, shape index: {}]
  %s4 = inlined_call_operand.hbm [shape: f32[32,1], index: 4, kind: input, shape index: {}]
  %s5 = inlined_call_operand.hbm [shape: f32[32,1], index: 5, kind: input, shape index: {}]
  %s6 = inlined_call_operand.hbm [shape: f32[32,1], index: 6, kind: input, shape index: {}]
  %s7 = inlined_call_operand.hbm [shape: bf16[16,32], index: 7, kind: input, shape index: {}]
  %s8 = inlined_call_operand.hbm [shape: f32[16,1], index: 8, kind: input, shape index: {}]
  %s9 = inlined_call_operand.hbm [shape: f32[2,1,32], index: 9, kind: output, shape index: {}]
  %s10 = sld [smem:[#allocation0]]
  $region97: #{attentive_pool.1} parent=0
    _
  %s12 = ssub.s32 1, %s10
  %s13 = scalar_select 0, %s12, %s10
  %15 = dma.hbm_to_smem %s0, 16, [#allocation3], [#allocation2]
  %16 = dma.done [#allocation2], 16
  %17 = sfence
  $region1: #{attentive_pool.1} parent=0
    #allocation4 [shape = 'u8[16384]{0}', space=vmem, size = 0x4000, scoped, tag = 'input window, operand 1']
    #allocation5 [shape = 's32[2]{0}', space=sflag, size = 0x8, scoped, tag = 'scoped memory for attentive_pool.1']
    #allocation6 [shape = 's32[2]{0}', space=sflag, size = 0x8, scoped, tag = 'scoped memory for attentive_pool.1']
    #allocation7 [shape = 'u8[8192]{0}', space=vmem, size = 0x2000, scoped, tag = 'input window, operand 2, single buffered']
    #allocation8 [shape = 's32[1]{0}', space=sflag, size = 0x4, scoped, tag = 'scoped memory for attentive_pool.1']
    #allocation9 [shape = 'u8[8192]{0}', space=vmem, size = 0x2000, scoped, tag = 'input window, operand 3, single buffered']
    #allocation10 [shape = 'u8[16384]{0}', space=vmem, size = 0x4000, scoped, tag = 'input window, operand 4, single buffered']
    #allocation11 [shape = 's32[1]{0}', space=sflag, size = 0x4, scoped, tag = 'scoped memory for attentive_pool.1']
    #allocation12 [shape = 'u8[16384]{0}', space=vmem, size = 0x4000, scoped, tag = 'input window, operand 5, single buffered']
    #allocation13 [shape = 'u8[16384]{0}', space=vmem, size = 0x4000, scoped, tag = 'input window, operand 6, single buffered']
    #allocation14 [shape = 's32[1]{0}', space=sflag, size = 0x4, scoped, tag = 'scoped memory for attentive_pool.1']
    #allocation15 [shape = 'u8[4096]{0}', space=vmem, size = 0x1000, scoped, tag = 'input window, operand 7, single buffered']
    #allocation16 [shape = 'u8[8192]{0}', space=vmem, size = 0x2000, scoped, tag = 'input window, operand 8, single buffered']
    #allocation17 [shape = 's32[1]{0}', space=sflag, size = 0x4, scoped, tag = 'scoped memory for attentive_pool.1']
    #allocation18 [shape = 'u8[1024]{0}', space=vmem, size = 0x400, scoped, tag = 'output window, operand 0']
    %18 = vsyncpa [#allocation5], 0
    %s19 = scalar_lea.sflag [#allocation5], 1
    %20 = vsyncpa %s19, 0
    %21 = vsyncpa [#allocation8], 0
    %22 = vsyncpa [#allocation11], 0
    %23 = vsyncpa [#allocation14], 0
    %24 = vsyncpa [#allocation17], 0
    %25 = vsyncpa [#allocation6], 0
    %s26 = scalar_lea.sflag [#allocation6], 1
    %27 = vsyncpa %s26, 0
    loop: start=0, step=1, limit=4
    $region2: #{attentive_pool.1} parent=1 // loop_pre_header
      _
    $region3: #{attentive_pool.1} parent=1 // loop_header
      %s29 = sphi 0, %s33
      %p30 = scmp.ge.s32.totalorder %s29, 4
      %s39 = sphi 0, %s41
      %s42 = sphi 0, %s39
      %s43 = sphi 0, %s42
      %s59 = sphi 0, %s43
      %s63 = sphi 0, %s63
      %s65 = sphi 0, %s63
      %s66 = sphi 0, %s65
      %s80 = sphi 0, %s66
      %s84 = sphi 0, %s84
      %s86 = sphi 0, %s84
      %s87 = sphi 0, %s86
      %s101 = sphi 0, %s87
      %s105 = sphi 0, %s105
      %s107 = sphi 0, %s105
      %s108 = sphi 0, %s107
      %s122 = sphi 0, %s108
      %s126 = sphi 0, %s126
      %s128 = sphi 0, %s126
      %s129 = sphi 0, %s128
      %s143 = sphi 0, %s129
      %s147 = sphi 0, %s147
      %s149 = sphi 0, %s147
      %s150 = sphi 0, %s149
      %s164 = sphi 0, %s150
      %s168 = sphi 0, %s168
      %s170 = sphi 0, %s168
      %s171 = sphi 0, %s170
      %s185 = sphi 0, %s171
      %s189 = sphi 0, %s189
      %s191 = sphi 0, %s189
      %s192 = sphi 0, %s191
      %s206 = sphi 0, %s192
      %s212 = sphi 0, %s214
      %s215 = sphi 0, %s212
      %s216 = sphi 0, %s215
      %s232 = sphi 0, %s216
    $region4: #{attentive_pool.1} parent=1 // loop_header_branch
      %32 = sbr.rel (%p30) target = $region8
    $region5: #{attentive_pool.1} parent=1 // loop_body
      %s34 = ssub.s32 %s29, 1
      %s35 = ssub.s32 %s29, 2
      %s36 = sadd.s32 %s29, 1
      %s37 = ssub.s32 %s29, %s36
      %p38 = scmp.eq.s32.totalorder %s37, 0
      %s40 = sadd.s32 %s39, 1
      %s41 = scalar_select %p38, %s39, %s40
      %p44 = pneg %p38
      %p45 = scmp.eq.s32.totalorder %s29, 1
      %p46 = por %p44, %p45
      %p47 = scmp.ne.s32.totalorder %s39, %s42
      %p48 = scmp.eq.s32.totalorder %s29, 0
      %p49 = por %p47, %p48
      %p50 = scmp.ne.s32.totalorder %s39, %s42
      %p51 = scmp.eq.s32.totalorder %s34, 1
      %p52 = por %p50, %p51
      %p53 = scmp.ne.s32.totalorder %s42, %s43
      %p54 = scmp.eq.s32.totalorder %s34, 0
      %p55 = por %p53, %p54
      %p56 = scmp.ne.s32.totalorder %s42, %s43
      %p57 = scmp.eq.s32.totalorder %s35, 1
      %p58 = por %p56, %p57
      %p60 = scmp.ne.s32.totalorder %s43, %s59
      %p61 = scmp.eq.s32.totalorder %s35, 0
      %p62 = por %p60, %p61
      %s64 = sadd.s32 %s63, 1
      %p67 = scmp.eq.s32.totalorder %s29, 1
      %p68 = scmp.ne.s32.totalorder %s63, %s65
      %p69 = scmp.eq.s32.totalorder %s29, 0
      %p70 = por %p68, %p69
      %p71 = scmp.ne.s32.totalorder %s63, %s65
      %p72 = scmp.eq.s32.totalorder %s34, 1
      %p73 = por %p71, %p72
      %p74 = scmp.ne.s32.totalorder %s65, %s66
      %p75 = scmp.eq.s32.totalorder %s34, 0
      %p76 = por %p74, %p75
      %p77 = scmp.ne.s32.totalorder %s65, %s66
      %p78 = scmp.eq.s32.totalorder %s35, 1
      %p79 = por %p77, %p78
      %p81 = scmp.ne.s32.totalorder %s66, %s80
      %p82 = scmp.eq.s32.totalorder %s35, 0
      %p83 = por %p81, %p82
      %s85 = sadd.s32 %s84, 1
      %p88 = scmp.eq.s32.totalorder %s29, 1
      %p89 = scmp.ne.s32.totalorder %s84, %s86
      %p90 = scmp.eq.s32.totalorder %s29, 0
      %p91 = por %p89, %p90
      %p92 = scmp.ne.s32.totalorder %s84, %s86
      %p93 = scmp.eq.s32.totalorder %s34, 1
      %p94 = por %p92, %p93
      %p95 = scmp.ne.s32.totalorder %s86, %s87
      %p96 = scmp.eq.s32.totalorder %s34, 0
      %p97 = por %p95, %p96
      %p98 = scmp.ne.s32.totalorder %s86, %s87
      %p99 = scmp.eq.s32.totalorder %s35, 1
      %p100 = por %p98, %p99
      %p102 = scmp.ne.s32.totalorder %s87, %s101
      %p103 = scmp.eq.s32.totalorder %s35, 0
      %p104 = por %p102, %p103
      %s106 = sadd.s32 %s105, 1
      %p109 = scmp.eq.s32.totalorder %s29, 1
      %p110 = scmp.ne.s32.totalorder %s105, %s107
      %p111 = scmp.eq.s32.totalorder %s29, 0
      %p112 = por %p110, %p111
      %p113 = scmp.ne.s32.totalorder %s105, %s107
      %p114 = scmp.eq.s32.totalorder %s34, 1
      %p115 = por %p113, %p114
      %p116 = scmp.ne.s32.totalorder %s107, %s108
      %p117 = scmp.eq.s32.totalorder %s34, 0
      %p118 = por %p116, %p117
      %p119 = scmp.ne.s32.totalorder %s107, %s108
      %p120 = scmp.eq.s32.totalorder %s35, 1
      %p121 = por %p119, %p120
      %p123 = scmp.ne.s32.totalorder %s108, %s122
      %p124 = scmp.eq.s32.totalorder %s35, 0
      %p125 = por %p123, %p124
      %s127 = sadd.s32 %s126, 1
      %p130 = scmp.eq.s32.totalorder %s29, 1
      %p131 = scmp.ne.s32.totalorder %s126, %s128
      %p132 = scmp.eq.s32.totalorder %s29, 0
      %p133 = por %p131, %p132
      %p134 = scmp.ne.s32.totalorder %s126, %s128
      %p135 = scmp.eq.s32.totalorder %s34, 1
      %p136 = por %p134, %p135
      %p137 = scmp.ne.s32.totalorder %s128, %s129
      %p138 = scmp.eq.s32.totalorder %s34, 0
      %p139 = por %p137, %p138
      %p140 = scmp.ne.s32.totalorder %s128, %s129
      %p141 = scmp.eq.s32.totalorder %s35, 1
      %p142 = por %p140, %p141
      %p144 = scmp.ne.s32.totalorder %s129, %s143
      %p145 = scmp.eq.s32.totalorder %s35, 0
      %p146 = por %p144, %p145
      %s148 = sadd.s32 %s147, 1
      %p151 = scmp.eq.s32.totalorder %s29, 1
      %p152 = scmp.ne.s32.totalorder %s147, %s149
      %p153 = scmp.eq.s32.totalorder %s29, 0
      %p154 = por %p152, %p153
      %p155 = scmp.ne.s32.totalorder %s147, %s149
      %p156 = scmp.eq.s32.totalorder %s34, 1
      %p157 = por %p155, %p156
      %p158 = scmp.ne.s32.totalorder %s149, %s150
      %p159 = scmp.eq.s32.totalorder %s34, 0
      %p160 = por %p158, %p159
      %p161 = scmp.ne.s32.totalorder %s149, %s150
      %p162 = scmp.eq.s32.totalorder %s35, 1
      %p163 = por %p161, %p162
      %p165 = scmp.ne.s32.totalorder %s150, %s164
      %p166 = scmp.eq.s32.totalorder %s35, 0
      %p167 = por %p165, %p166
      %s169 = sadd.s32 %s168, 1
      %p172 = scmp.eq.s32.totalorder %s29, 1
      %p173 = scmp.ne.s32.totalorder %s168, %s170
      %p174 = scmp.eq.s32.totalorder %s29, 0
      %p175 = por %p173, %p174
      %p176 = scmp.ne.s32.totalorder %s168, %s170
      %p177 = scmp.eq.s32.totalorder %s34, 1
      %p178 = por %p176, %p177
      %p179 = scmp.ne.s32.totalorder %s170, %s171
      %p180 = scmp.eq.s32.totalorder %s34, 0
      %p181 = por %p179, %p180
      %p182 = scmp.ne.s32.totalorder %s170, %s171
      %p183 = scmp.eq.s32.totalorder %s35, 1
      %p184 = por %p182, %p183
      %p186 = scmp.ne.s32.totalorder %s171, %s185
      %p187 = scmp.eq.s32.totalorder %s35, 0
      %p188 = por %p186, %p187
      %s190 = sadd.s32 %s189, 1
      %p193 = scmp.eq.s32.totalorder %s29, 1
      %p194 = scmp.ne.s32.totalorder %s189, %s191
      %p195 = scmp.eq.s32.totalorder %s29, 0
      %p196 = por %p194, %p195
      %p197 = scmp.ne.s32.totalorder %s189, %s191
      %p198 = scmp.eq.s32.totalorder %s34, 1
      %p199 = por %p197, %p198
      %p200 = scmp.ne.s32.totalorder %s191, %s192
      %p201 = scmp.eq.s32.totalorder %s34, 0
      %p202 = por %p200, %p201
      %p203 = scmp.ne.s32.totalorder %s191, %s192
      %p204 = scmp.eq.s32.totalorder %s35, 1
      %p205 = por %p203, %p204
      %p207 = scmp.ne.s32.totalorder %s192, %s206
      %p208 = scmp.eq.s32.totalorder %s35, 0
      %p209 = por %p207, %p208
      %s210 = ssub.s32 %s29, %s36
      %p211 = scmp.eq.s32.totalorder %s210, 0
      %s213 = sadd.s32 %s212, 1
      %s214 = scalar_select %p211, %s212, %s213
      %p217 = pneg %p211
      %p218 = scmp.eq.s32.totalorder %s29, 1
      %p219 = por %p217, %p218
      %p220 = scmp.ne.s32.totalorder %s212, %s215
      %p221 = scmp.eq.s32.totalorder %s29, 0
      %p222 = por %p220, %p221
      %p223 = scmp.ne.s32.totalorder %s212, %s215
      %p224 = scmp.eq.s32.totalorder %s34, 1
      %p225 = por %p223, %p224
      %p226 = scmp.ne.s32.totalorder %s215, %s216
      %p227 = scmp.eq.s32.totalorder %s34, 0
      %p228 = por %p226, %p227
      %p229 = scmp.ne.s32.totalorder %s215, %s216
      %p230 = scmp.eq.s32.totalorder %s35, 1
      %p231 = por %p229, %p230
      %p233 = scmp.ne.s32.totalorder %s216, %s232
      %p234 = scmp.eq.s32.totalorder %s35, 0
      %p235 = por %p233, %p234
      %p236 = scmp.le.s32.totalorder 1, %s29
      %p237 = scmp.lt.s32.totalorder %s29, 3
      %p238 = pnand %p236, %p237
      %p239 = pneg %p238
      // Predicated region
      $region9: #{attentive_pool.1} parent=5 // pred_check
        _
      $region10: #{attentive_pool.1} parent=5 // pred_check_branch
        %241 = sbr.rel (%p238) target = $region12
      $region11: #{attentive_pool.1} parent=5 // pred_region
        %s242 = ssub.s32 %s29, 1
        // Predicated region
        $region13: #{attentive_pool.1} parent=11 // pred_check
          %p243 = pneg %p76
        $region14: #{attentive_pool.1} parent=11 // pred_check_branch
          %245 = sbr.rel (%p243) target = $region16
        $region15: #{attentive_pool.1} parent=11 // pred_region
          %s247 = ssub.s32 256, 256
          %248 = vsyncadd [#allocation8], %s247
          %s249 = sshll.u32 [#allocation7], 4
          %s250 = int_to_ptr.vmem [resolvable:$true] %s249
          %255 = dma.hbm_to_vmem [thread:$0]  %s2, 256, %s250, [#allocation8], 64, 64, 4
        $region16: #{attentive_pool.1} parent=11 // pred_fallthru
          _
        // Predicated region
        $region17: #{attentive_pool.1} parent=11 // pred_check
          %p256 = pneg %p97
        $region18: #{attentive_pool.1} parent=11 // pred_check_branch
          %258 = sbr.rel (%p256) target = $region20
        $region19: #{attentive_pool.1} parent=11 // pred_region
          %s260 = ssub.s32 256, 256
          %261 = vsyncadd [#allocation8], %s260
          %s262 = sshll.u32 [#allocation9], 4
          %s263 = int_to_ptr.vmem [resolvable:$true] %s262
          %268 = dma.hbm_to_vmem [thread:$0]  %s3, 256, %s263, [#allocation8], 64, 64, 4
        $region20: #{attentive_pool.1} parent=11 // pred_fallthru
          _
        // Predicated region
        $region21: #{attentive_pool.1} parent=11 // pred_check
          %p269 = pneg %p118
        $region22: #{attentive_pool.1} parent=11 // pred_check_branch
          %271 = sbr.rel (%p269) target = $region24
        $region23: #{attentive_pool.1} parent=11 // pred_region
          %s273 = ssub.s32 512, 512
          %274 = vsyncadd [#allocation11], %s273
          %s275 = sshll.u32 [#allocation10], 4
          %s276 = int_to_ptr.vmem [resolvable:$true] %s275
          %281 = dma.hbm_to_vmem [thread:$0]  %s4, 512, %s276, [#allocation11], 128, 128, 8
        $region24: #{attentive_pool.1} parent=11 // pred_fallthru
          _
        // Predicated region
        $region25: #{attentive_pool.1} parent=11 // pred_check
          %p282 = pneg %p139
        $region26: #{attentive_pool.1} parent=11 // pred_check_branch
          %284 = sbr.rel (%p282) target = $region28
        $region27: #{attentive_pool.1} parent=11 // pred_region
          %s286 = ssub.s32 512, 512
          %287 = vsyncadd [#allocation11], %s286
          %s288 = sshll.u32 [#allocation12], 4
          %s289 = int_to_ptr.vmem [resolvable:$true] %s288
          %294 = dma.hbm_to_vmem [thread:$0]  %s5, 512, %s289, [#allocation11], 128, 128, 8
        $region28: #{attentive_pool.1} parent=11 // pred_fallthru
          _
        // Predicated region
        $region29: #{attentive_pool.1} parent=11 // pred_check
          %p295 = pneg %p160
        $region30: #{attentive_pool.1} parent=11 // pred_check_branch
          %297 = sbr.rel (%p295) target = $region32
        $region31: #{attentive_pool.1} parent=11 // pred_region
          %s299 = ssub.s32 512, 512
          %300 = vsyncadd [#allocation14], %s299
          %s301 = sshll.u32 [#allocation13], 4
          %s302 = int_to_ptr.vmem [resolvable:$true] %s301
          %307 = dma.hbm_to_vmem [thread:$0]  %s6, 512, %s302, [#allocation14], 128, 128, 8
        $region32: #{attentive_pool.1} parent=11 // pred_fallthru
          _
        // Predicated region
        $region33: #{attentive_pool.1} parent=11 // pred_check
          %p308 = pneg %p181
        $region34: #{attentive_pool.1} parent=11 // pred_check_branch
          %310 = sbr.rel (%p308) target = $region36
        $region35: #{attentive_pool.1} parent=11 // pred_region
          %s312 = ssub.s32 128, 128
          %313 = vsyncadd [#allocation14], %s312
          %s314 = sshll.u32 [#allocation15], 4
          %s315 = int_to_ptr.vmem [resolvable:$true] %s314
          %320 = dma.hbm_to_vmem [thread:$0]  %s7, 128, %s315, [#allocation14], 64, 64, 4
        $region36: #{attentive_pool.1} parent=11 // pred_fallthru
          _
        // Predicated region
        $region37: #{attentive_pool.1} parent=11 // pred_check
          %p321 = pneg %p202
        $region38: #{attentive_pool.1} parent=11 // pred_check_branch
          %323 = sbr.rel (%p321) target = $region40
        $region39: #{attentive_pool.1} parent=11 // pred_region
          %s325 = ssub.s32 256, 256
          %326 = vsyncadd [#allocation17], %s325
          %s327 = sshll.u32 [#allocation16], 4
          %s328 = int_to_ptr.vmem [resolvable:$true] %s327
          %333 = dma.hbm_to_vmem [thread:$0]  %s8, 256, %s328, [#allocation17], 128, 128, 8
        $region40: #{attentive_pool.1} parent=11 // pred_fallthru
          _
      $region12: #{attentive_pool.1} parent=5 // pred_fallthru
        _
      %p334 = scmp.lt.s32.totalorder %s29, 2
      // Predicated region
      $region41: #{attentive_pool.1} parent=5 // pred_check
        %p335 = pneg %p334
      $region42: #{attentive_pool.1} parent=5 // pred_check_branch
        %337 = sbr.rel (%p335) target = $region44
      $region43: #{attentive_pool.1} parent=5 // pred_region
        // Predicated region
        $region45: #{attentive_pool.1} parent=43 // pred_check
          %p338 = pneg %p49
        $region46: #{attentive_pool.1} parent=43 // pred_check_branch
          %340 = sbr.rel (%p338) target = $region48
        $region47: #{attentive_pool.1} parent=43 // pred_region
          %s341 = sand.u32 %s39, 1
          %s342 = scalar_lea.sflag [#allocation5], %s341
          %s343 = sand.u32 %s39, 1
          %s344 = smul.addr %s343, 16
          %s345 = scalar_lea.vmem [#allocation4], %s344
          %s347 = ssub.s32 256, 256
          %348 = vsyncadd %s342, %s347
          %s349 = smul.addr %s29, 2
          %s350 = smul.addr %s349, 128
          %s351 = scalar_lea.hbm %s1, %s350
          %s352 = sshll.u32 %s345, 4
          %s353 = int_to_ptr.vmem [resolvable:$true] %s352
          %358 = dma.hbm_to_vmem [thread:$0]  %s351, 256, %s353, %s342, 128, 128, 8
        $region48: #{attentive_pool.1} parent=43 // pred_fallthru
          _
      $region44: #{attentive_pool.1} parent=5 // pred_fallthru
        _
      %p359 = scmp.le.s32.totalorder 1, %s29
      %p360 = scmp.lt.s32.totalorder %s29, 3
      %p361 = pnand %p359, %p360
      %p362 = pneg %p361
      // Predicated region
      $region49: #{attentive_pool.1} parent=5 // pred_check
        _
      $region50: #{attentive_pool.1} parent=5 // pred_check_branch
        %364 = sbr.rel (%p361) target = $region52
      $region51: #{attentive_pool.1} parent=5 // pred_region
        %s365 = ssub.s32 %s29, 1
        %s366 = sand.u32 %s42, 1
        %s367 = scalar_lea.sflag [#allocation5], %s366
        %s368 = sand.u32 %s42, 1
        %s369 = smul.addr %s368, 16
        %s370 = scalar_lea.vmem [#allocation4], %s369
        // Predicated region
        $region53: #{attentive_pool.1} parent=51 // pred_check
          %p371 = pneg %p55
        $region54: #{attentive_pool.1} parent=51 // pred_check_branch
          %373 = sbr.rel (%p371) target = $region56
        $region55: #{attentive_pool.1} parent=51 // pred_region
          %374 = dma.done %s367, 256
        $region56: #{attentive_pool.1} parent=51 // pred_fallthru
          _
        // Predicated region
        $region57: #{attentive_pool.1} parent=51 // pred_check
          %p375 = pneg %p76
        $region58: #{attentive_pool.1} parent=51 // pred_check_branch
          %377 = sbr.rel (%p375) target = $region60
        $region59: #{attentive_pool.1} parent=51 // pred_region
          %378 = dma.done [#allocation8], 256
        $region60: #{attentive_pool.1} parent=51 // pred_fallthru
          _
        // Predicated region
        $region61: #{attentive_pool.1} parent=51 // pred_check
          %p379 = pneg %p97
        $region62: #{attentive_pool.1} parent=51 // pred_check_branch
          %381 = sbr.rel (%p379) target = $region64
        $region63: #{attentive_pool.1} parent=51 // pred_region
          %382 = dma.done [#allocation8], 256
        $region64: #{attentive_pool.1} parent=51 // pred_fallthru
          _
        // Predicated region
        $region65: #{attentive_pool.1} parent=51 // pred_check
          %p383 = pneg %p118
        $region66: #{attentive_pool.1} parent=51 // pred_check_branch
          %385 = sbr.rel (%p383) target = $region68
        $region67: #{attentive_pool.1} parent=51 // pred_region
          %386 = dma.done [#allocation11], 512
        $region68: #{attentive_pool.1} parent=51 // pred_fallthru
          _
        // Predicated region
        $region69: #{attentive_pool.1} parent=51 // pred_check
          %p387 = pneg %p139
        $region70: #{attentive_pool.1} parent=51 // pred_check_branch
          %389 = sbr.rel (%p387) target = $region72
        $region71: #{attentive_pool.1} parent=51 // pred_region
          %390 = dma.done [#allocation11], 512
        $region72: #{attentive_pool.1} parent=51 // pred_fallthru
          _
        // Predicated region
        $region73: #{attentive_pool.1} parent=51 // pred_check
          %p391 = pneg %p160
        $region74: #{attentive_pool.1} parent=51 // pred_check_branch
          %393 = sbr.rel (%p391) target = $region76
        $region75: #{attentive_pool.1} parent=51 // pred_region
          %394 = dma.done [#allocation14], 512
        $region76: #{attentive_pool.1} parent=51 // pred_fallthru
          _
        // Predicated region
        $region77: #{attentive_pool.1} parent=51 // pred_check
          %p395 = pneg %p181
        $region78: #{attentive_pool.1} parent=51 // pred_check_branch
          %397 = sbr.rel (%p395) target = $region80
        $region79: #{attentive_pool.1} parent=51 // pred_region
          %398 = dma.done [#allocation14], 128
        $region80: #{attentive_pool.1} parent=51 // pred_fallthru
          _
        // Predicated region
        $region81: #{attentive_pool.1} parent=51 // pred_check
          %p399 = pneg %p202
        $region82: #{attentive_pool.1} parent=51 // pred_check_branch
          %401 = sbr.rel (%p399) target = $region84
        $region83: #{attentive_pool.1} parent=51 // pred_region
          %402 = dma.done [#allocation17], 256
        $region84: #{attentive_pool.1} parent=51 // pred_fallthru
          _
        %s403 = sand.u32 %s42, 1
        %s404 = scalar_lea.sflag [#allocation5], %s403
        %s405 = sand.u32 %s42, 1
        %s406 = smul.addr %s405, 16
        %s407 = scalar_lea.vmem [#allocation4], %s406
        %p408 = pneg %p55
        %p409 = pneg %p52
        %p410 = pneg %p76
        %p411 = pneg %p73
        %p412 = pneg %p97
        %p413 = pneg %p94
        %p414 = pneg %p118
        %p415 = pneg %p115
        %p416 = pneg %p139
        %p417 = pneg %p136
        %p418 = pneg %p160
        %p419 = pneg %p157
        %p420 = pneg %p181
        %p421 = pneg %p178
        %p422 = pneg %p202
        %p423 = pneg %p199
        %p424 = pneg %p228
        %p425 = pneg %p225
        %s426 = sand.u32 %s215, 1
        %s427 = scalar_lea.sflag [#allocation6], %s426
        %s428 = sand.u32 %s215, 1
        %s429 = scalar_lea.vmem [#allocation18], %s428
        %s431 = sld [smem:[#allocation3 + %s34]]
        %v432 = vld [vmem:[%s370] sm:$0xff]
        %v433 = vld [vmem:[%s370 + $0x8] sm:$0xff]
        %p434 = scmp.gt.s32.totalorder %s431, 1
        %s435 = scalar_select %p434, %s431, 1
        %s436 = scvt.s32.f32 %s435
        %v437 = vstv %s436
        %v438 = vrcp.pop %v437
        %s439 = vtos %v438
        %v440 = vlaneseq
        %v441 = vand.u32 %v440, 127
        %v442 = vstv %s431
        %vm443 = vcmp.lt.s32.totalorder %v441, %v442
        %v444 = vlaneseq
        %v445 = vshrl.u32 %v444, 7
        %v446 = vadd.s32 %v445, 8
        %v447 = vadd.s32 %v445, 16
        %v448 = vadd.s32 %v445, 24
        %v449 = vadd.s32 %v445, 32
        %v450 = vadd.s32 %v445, 40
        %v451 = vadd.s32 %v445, 48
        %v452 = vadd.s32 %v445, 56
        %v453 = vadd.s32 %v445, 64
        %v454 = vadd.s32 %v445, 72
        %v455 = vadd.s32 %v445, 80
        %v456 = vadd.s32 %v445, 88
        %v457 = vadd.s32 %v445, 96
        %v458 = vadd.s32 %v445, 104
        %v459 = vadd.s32 %v445, 112
        %v460 = vadd.s32 %v445, 120
        %vm461 = vcmp.lt.s32.totalorder %v445, %v442
        %vm462 = vcmp.lt.s32.totalorder %v446, %v442
        %vm463 = vcmp.lt.s32.totalorder %v447, %v442
        %vm464 = vcmp.lt.s32.totalorder %v448, %v442
        %vm465 = vcmp.lt.s32.totalorder %v449, %v442
        %vm466 = vcmp.lt.s32.totalorder %v450, %v442
        %vm467 = vcmp.lt.s32.totalorder %v451, %v442
        %vm468 = vcmp.lt.s32.totalorder %v452, %v442
        %vm469 = vcmp.lt.s32.totalorder %v453, %v442
        %vm470 = vcmp.lt.s32.totalorder %v454, %v442
        %vm471 = vcmp.lt.s32.totalorder %v455, %v442
        %vm472 = vcmp.lt.s32.totalorder %v456, %v442
        %vm473 = vcmp.lt.s32.totalorder %v457, %v442
        %vm474 = vcmp.lt.s32.totalorder %v458, %v442
        %vm475 = vcmp.lt.s32.totalorder %v459, %v442
        %vm476 = vcmp.lt.s32.totalorder %v460, %v442
        %v477 = vsel %vm461, 1, 0
        %v478 = vsel %vm462, 1, 0
        %v479 = vsel %vm463, 1, 0
        %v480 = vsel %vm464, 1, 0
        %v481 = vsel %vm465, 1, 0
        %v482 = vsel %vm466, 1, 0
        %v483 = vsel %vm467, 1, 0
        %v484 = vsel %vm468, 1, 0
        %v485 = vsel %vm469, 1, 0
        %v486 = vsel %vm470, 1, 0
        %v487 = vsel %vm471, 1, 0
        %v488 = vsel %vm472, 1, 0
        %v489 = vsel %vm473, 1, 0
        %v490 = vsel %vm474, 1, 0
        %v491 = vsel %vm475, 1, 0
        %v492 = vsel %vm476, 1, 0
        %v493 = vcvt.s32.f32 %v477
        %v494 = vcvt.s32.f32 %v478
        %v495 = vcvt.s32.f32 %v479
        %v496 = vcvt.s32.f32 %v480
        %v497 = vcvt.s32.f32 %v481
        %v498 = vcvt.s32.f32 %v482
        %v499 = vcvt.s32.f32 %v483
        %v500 = vcvt.s32.f32 %v484
        %v501 = vcvt.s32.f32 %v485
        %v502 = vcvt.s32.f32 %v486
        %v503 = vcvt.s32.f32 %v487
        %v504 = vcvt.s32.f32 %v488
        %v505 = vcvt.s32.f32 %v489
        %v506 = vcvt.s32.f32 %v490
        %v507 = vcvt.s32.f32 %v491
        %v508 = vcvt.s32.f32 %v492
        %509 = vmatprep.subr.mxu0 0.0
        %510 = vmatpush1.msra.mxu0 %v493
        %511 = vmatprep.subr.mxu0 0.0
        %512 = vmatpush1.msra.mxu0 %v494
        %513 = vmatprep.subr.mxu0 0.0
        %514 = vmatpush1.msra.mxu0 %v495
        %515 = vmatprep.subr.mxu0 0.0
        %516 = vmatpush1.msra.mxu0 %v496
        %517 = vmatprep.subr.mxu0 0.0
        %518 = vmatpush1.msra.mxu0 %v497
        %519 = vmatprep.subr.mxu0 0.0
        %520 = vmatpush1.msra.mxu0 %v498
        %521 = vmatprep.subr.mxu0 0.0
        %522 = vmatpush1.msra.mxu0 %v499
        %523 = vmatprep.subr.mxu0 0.0
        %524 = vmatpush1.msra.mxu0 %v500
        %525 = vmatprep.subr.mxu0 0.0
        %526 = vmatpush1.msra.mxu0 %v501
        %527 = vmatprep.subr.mxu0 0.0
        %528 = vmatpush1.msra.mxu0 %v502
        %529 = vmatprep.subr.mxu0 0.0
        %530 = vmatpush1.msra.mxu0 %v503
        %531 = vmatprep.subr.mxu0 0.0
        %532 = vmatpush1.msra.mxu0 %v504
        %533 = vmatprep.subr.mxu0 0.0
        %534 = vmatpush1.msra.mxu0 %v505
        %535 = vmatprep.subr.mxu0 0.0
        %536 = vmatpush1.msra.mxu0 %v506
        %537 = vmatprep.subr.mxu0 0.0
        %538 = vmatpush1.msra.mxu0 %v507
        %539 = vmatprep.subr.mxu0 0.0
        %540 = vmatpush1.msra.mxu0 %v508
        %541 = vmatprep.subr.mxu0 0.0
        %542 = vmatpush1.msra.mxu0 0.0
        %543 = vmatprep.subr.mxu0 0.0
        %544 = vmatpush1.msra.mxu0 0.0
        %545 = vmatprep.subr.mxu0 0.0
        %546 = vmatpush1.msra.mxu0 0.0
        %547 = vmatprep.subr.mxu0 0.0
        %548 = vmatpush1.msra.mxu0 0.0
        %549 = vmatprep.subr.mxu0 0.0
        %550 = vmatpush1.msra.mxu0 0.0
        %551 = vmatprep.subr.mxu0 0.0
        %552 = vmatpush1.msra.mxu0 0.0
        %553 = vmatprep.subr.mxu0 0.0
        %554 = vmatpush1.msra.mxu0 0.0
        %555 = vmatprep.subr.mxu0 0.0
        %556 = vmatpush1.msra.mxu0 0.0
        %557 = vmatprep.subr.mxu0 0.0
        %558 = vmatpush1.msra.mxu0 0.0
        %559 = vmatprep.subr.mxu0 0.0
        %560 = vmatpush1.msra.mxu0 0.0
        %561 = vmatprep.subr.mxu0 0.0
        %562 = vmatpush1.msra.mxu0 0.0
        %563 = vmatprep.subr.mxu0 0.0
        %564 = vmatpush1.msra.mxu0 0.0
        %565 = vmatprep.subr.mxu0 0.0
        %566 = vmatpush1.msra.mxu0 0.0
        %567 = vmatprep.subr.mxu0 0.0
        %568 = vmatpush1.msra.mxu0 0.0
        %569 = vmatprep.subr.mxu0 0.0
        %570 = vmatpush1.msra.mxu0 0.0
        %571 = vmatprep.subr.mxu0 0.0
        %572 = vmatpush1.msra.mxu0 0.0
        %573 = vmatprep.mubr.f32.mxu0 0.0
        %574 = vmatmul.mubr.f32.gmra.mrb[0].mxu0 %v432
        %v575 = vpop.f32.mrb[0].mxu0
        %v576 = vadd.f32 0.0, %v575
        %v577 = vpop.f32.mrb[0].mxu0
        %578 = vmatprep.mubr.f32.mxu0 0.0
        %579 = vmatmul.mubr.f32.gmra.mrb[0].mxu0 %v433
        %v580 = vpop.f32.mrb[0].mxu0
        %v581 = vadd.f32 0.0, %v580
        %v582 = vpop.f32.mrb[0].mxu0
        %583 = vdwg.mxu0
        %v584 = vmul.f32 %v432, %v432
        %v585 = vmul.f32 %v433, %v433
        %586 = vmatprep.subr.mxu0 0.0
        %587 = vmatpush1.msra.mxu0 %v493
        %588 = vmatprep.subr.mxu0 0.0
        %589 = vmatpush1.msra.mxu0 %v494
        %590 = vmatprep.subr.mxu0 0.0
        %591 = vmatpush1.msra.mxu0 %v495
        %592 = vmatprep.subr.mxu0 0.0
        %593 = vmatpush1.msra.mxu0 %v496
        %594 = vmatprep.subr.mxu0 0.0
        %595 = vmatpush1.msra.mxu0 %v497
        %596 = vmatprep.subr.mxu0 0.0
        %597 = vmatpush1.msra.mxu0 %v498
        %598 = vmatprep.subr.mxu0 0.0
        %599 = vmatpush1.msra.mxu0 %v499
        %600 = vmatprep.subr.mxu0 0.0
        %601 = vmatpush1.msra.mxu0 %v500
        %602 = vmatprep.subr.mxu0 0.0
        %603 = vmatpush1.msra.mxu0 %v501
        %604 = vmatprep.subr.mxu0 0.0
        %605 = vmatpush1.msra.mxu0 %v502
        %606 = vmatprep.subr.mxu0 0.0
        %607 = vmatpush1.msra.mxu0 %v503
        %608 = vmatprep.subr.mxu0 0.0
        %609 = vmatpush1.msra.mxu0 %v504
        %610 = vmatprep.subr.mxu0 0.0
        %611 = vmatpush1.msra.mxu0 %v505
        %612 = vmatprep.subr.mxu0 0.0
        %613 = vmatpush1.msra.mxu0 %v506
        %614 = vmatprep.subr.mxu0 0.0
        %615 = vmatpush1.msra.mxu0 %v507
        %616 = vmatprep.subr.mxu0 0.0
        %617 = vmatpush1.msra.mxu0 %v508
        %618 = vmatprep.subr.mxu0 0.0
        %619 = vmatpush1.msra.mxu0 0.0
        %620 = vmatprep.subr.mxu0 0.0
        %621 = vmatpush1.msra.mxu0 0.0
        %622 = vmatprep.subr.mxu0 0.0
        %623 = vmatpush1.msra.mxu0 0.0
        %624 = vmatprep.subr.mxu0 0.0
        %625 = vmatpush1.msra.mxu0 0.0
        %626 = vmatprep.subr.mxu0 0.0
        %627 = vmatpush1.msra.mxu0 0.0
        %628 = vmatprep.subr.mxu0 0.0
        %629 = vmatpush1.msra.mxu0 0.0
        %630 = vmatprep.subr.mxu0 0.0
        %631 = vmatpush1.msra.mxu0 0.0
        %632 = vmatprep.subr.mxu0 0.0
        %633 = vmatpush1.msra.mxu0 0.0
        %634 = vmatprep.subr.mxu0 0.0
        %635 = vmatpush1.msra.mxu0 0.0
        %636 = vmatprep.subr.mxu0 0.0
        %637 = vmatpush1.msra.mxu0 0.0
        %638 = vmatprep.subr.mxu0 0.0
        %639 = vmatpush1.msra.mxu0 0.0
        %640 = vmatprep.subr.mxu0 0.0
        %641 = vmatpush1.msra.mxu0 0.0
        %642 = vmatprep.subr.mxu0 0.0
        %643 = vmatpush1.msra.mxu0 0.0
        %644 = vmatprep.subr.mxu0 0.0
        %645 = vmatpush1.msra.mxu0 0.0
        %646 = vmatprep.subr.mxu0 0.0
        %647 = vmatpush1.msra.mxu0 0.0
        %648 = vmatprep.subr.mxu0 0.0
        %649 = vmatpush1.msra.mxu0 0.0
        %650 = vmatprep.mubr.f32.mxu0 0.0
        %651 = vmatmul.mubr.f32.gmra.mrb[0].mxu0 %v584
        %v652 = vpop.f32.mrb[0].mxu0
        %v653 = vadd.f32 0.0, %v652
        %v654 = vpop.f32.mrb[0].mxu0
        %655 = vmatprep.mubr.f32.mxu0 0.0
        %656 = vmatmul.mubr.f32.gmra.mrb[0].mxu0 %v585
        %v657 = vpop.f32.mrb[0].mxu0
        %v658 = vadd.f32 0.0, %v657
        %v659 = vpop.f32.mrb[0].mxu0
        %660 = vdwg.mxu0
        %v661 = vstv %s439
        %v662 = vmul.f32 %v576, %v661
        %v663 = vmul.f32 %v581, %v661
        %v664 = vmul.f32 %v653, %v661
        %v665 = vmul.f32 %v658, %v661
        %v666 = vmul.f32 %v662, %v662
        %v667 = vmul.f32 %v663, %v663
        %v668 = vsub.f32 %v664, %v666
        %v669 = vsub.f32 %v665, %v667
        %v670 = vmax.f32 %v668, 1e-10
        %v671 = vmax.f32 %v669, 1e-10
        %v672 = vrsqrt.pop %v670
        %v673 = vmul.f32 %v670, %v672
        %vm674 = vcmp.eq.f32.partialorder %v670, inf
        %v675 = vsel %vm674, %v670, %v673
        %vm676 = vcmp.eq.f32.partialorder %v670, 0.0
        %v677 = vand.u32 %v670, 2147483648
        %v678 = vsel %vm676, %v677, %v675
        %v679 = vrsqrt.pop %v671
        %v680 = vmul.f32 %v671, %v679
        %vm681 = vcmp.eq.f32.partialorder %v671, inf
        %v682 = vsel %vm681, %v671, %v680
        %vm683 = vcmp.eq.f32.partialorder %v671, 0.0
        %v684 = vand.u32 %v671, 2147483648
        %v685 = vsel %vm683, %v684, %v682
        %v686 = vpack.c.bf16 %v433, %v432
        %v687 = vpack.c.bf16 %v663, %v662
        %v688 = vpack.c.bf16 %v685, %v678
        %v689 = vld [vmem:[#allocation9] sm:$0xf]
        %v690 = vld [vmem:[#allocation9 + $0x4] sm:$0xf]
        %v691 = vld [vmem:[#allocation9 + $0x8] sm:$0xf]
        %v692 = vld [vmem:[#allocation9 + $0xc] sm:$0xf]
        %v693 = vld [vmem:[#allocation10] sm:$0xff]
        %v694 = vld [vmem:[#allocation10 + $0x8] sm:$0xff]
        %v695 = vld [vmem:[#allocation10 + $0x10] sm:$0xff]
        %v696 = vld [vmem:[#allocation10 + $0x18] sm:$0xff]
        %v701 = vunpack.c.l.b16 %v689
        %v702 = vunpack.c.l.b16 %v690
        %v703 = vunpack.c.l.b16 %v691
        %v704 = vunpack.c.l.b16 %v692
        %v705 = vpack.c.b16 %v702, %v701
        %v706 = vpack.c.b16 %v704, %v703
        %vm707 = vcmask 261120
        %v709 = vsel %vm707, %v705, 0
        %v712 = vsel %vm707, %v706, 0
        %714 = vmatprep.subr.bf16.mxu0 0
        %715 = vmatpush1.bf16.msra.mxu0 %v687
        %716 = vmatprep.subr.bf16.mxu0 0
        %717 = vmatpush1.bf16.msra.mxu0 %v688
        %718 = vmatprep.subr.bf16.mxu0 0
        %719 = vmatpush1.bf16.msra.mxu0 0
        %720 = vmatprep.subr.bf16.mxu0 0
        %721 = vmatpush1.bf16.msra.mxu0 0
        %722 = vmatprep.subr.bf16.mxu0 0
        %723 = vmatpush1.bf16.msra.mxu0 0
        %724 = vmatprep.subr.bf16.mxu0 0
        %725 = vmatpush1.bf16.msra.mxu0 0
        %726 = vmatprep.subr.bf16.mxu0 0
        %727 = vmatpush1.bf16.msra.mxu0 0
        %728 = vmatprep.subr.bf16.mxu0 0
        %729 = vmatpush1.bf16.msra.mxu0 0
        %730 = vmatprep.subr.bf16.mxu0 0
        %731 = vmatpush1.bf16.msra.mxu0 0
        %732 = vmatprep.subr.bf16.mxu0 0
        %733 = vmatpush1.bf16.msra.mxu0 0
        %734 = vmatprep.subr.bf16.mxu0 0
        %735 = vmatpush1.bf16.msra.mxu0 0
        %736 = vmatprep.subr.bf16.mxu0 0
        %737 = vmatpush1.bf16.msra.mxu0 0
        %738 = vmatprep.subr.bf16.mxu0 0
        %739 = vmatpush1.bf16.msra.mxu0 0
        %740 = vmatprep.subr.bf16.mxu0 0
        %741 = vmatpush1.bf16.msra.mxu0 0
        %742 = vmatprep.subr.bf16.mxu0 0
        %743 = vmatpush1.bf16.msra.mxu0 0
        %744 = vmatprep.subr.bf16.mxu0 0
        %745 = vmatpush1.bf16.msra.mxu0 0
        %746 = vmatprep.mubr.bf16.mxu0 0
        %747 = vmatmul.mubr.bf16.gmra.mrb[0].mxu0 %v709
        %v748 = vpop.f32.mrb[0].mxu0
        %v749 = vadd.f32 %v693, %v748
        %v750 = vpop.f32.mrb[0].mxu0
        %v751 = vpop.f32.mrb[0].mxu0
        %v752 = vadd.f32 %v694, %v751
        %v753 = vpop.f32.mrb[0].mxu0
        %754 = vmatprep.mubr.bf16.mxu0 0
        %755 = vmatmul.mubr.bf16.gmra.mrb[0].mxu0 %v712
        %v756 = vpop.f32.mrb[0].mxu0
        %v757 = vadd.f32 %v695, %v756
        %v758 = vpop.f32.mrb[0].mxu0
        %v759 = vpop.f32.mrb[0].mxu0
        %v760 = vadd.f32 %v696, %v759
        %v761 = vpop.f32.mrb[0].mxu0
        %762 = vdwg.mxu0
        %v763 = vld [vmem:[#allocation7] sm:$0xf]
        %v764 = vld [vmem:[#allocation7 + $0x4] sm:$0xf]
        %v765 = vld [vmem:[#allocation7 + $0x8] sm:$0xf]
        %v766 = vld [vmem:[#allocation7 + $0xc] sm:$0xf]
        %768 = vset.pattern.permute.xlu0 0
        %769 = vperm.xlu0 %768, %v749
        %v770 = vpop.permute.xlu0 %769
        %773 = vset.pattern.permute.xlu0 0
        %774 = vperm.xlu0 %773, %v752
        %v775 = vpop.permute.xlu0 %774
        %778 = vset.pattern.permute.xlu0 0
        %779 = vperm.xlu0 %778, %v757
        %v780 = vpop.permute.xlu0 %779
        %783 = vset.pattern.permute.xlu0 0
        %784 = vperm.xlu0 %783, %v760
        %v785 = vpop.permute.xlu0 %784
        %v791 = vunpack.c.l.b16 %v763
        %v792 = vunpack.c.l.b16 %v764
        %v793 = vunpack.c.l.b16 %v765
        %v794 = vunpack.c.l.b16 %v766
        %v795 = vpack.c.b16 %v792, %v791
        %v796 = vpack.c.b16 %v794, %v793
        %vm797 = vcmask 130048
        %v799 = vsel %vm797, %v795, 0
        %v802 = vsel %vm797, %v796, 0
        %804 = vmatprep.subr.bf16.mxu0 0
        %805 = vmatpush1.bf16.msra.mxu0 %v686
        %806 = vmatprep.subr.bf16.mxu0 0
        %807 = vmatpush1.bf16.msra.mxu0 0
        %808 = vmatprep.subr.bf16.mxu0 0
        %809 = vmatpush1.bf16.msra.mxu0 0
        %810 = vmatprep.subr.bf16.mxu0 0
        %811 = vmatpush1.bf16.msra.mxu0 0
        %812 = vmatprep.subr.bf16.mxu0 0
        %813 = vmatpush1.bf16.msra.mxu0 0
        %814 = vmatprep.subr.bf16.mxu0 0
        %815 = vmatpush1.bf16.msra.mxu0 0
        %816 = vmatprep.subr.bf16.mxu0 0
        %817 = vmatpush1.bf16.msra.mxu0 0
        %818 = vmatprep.subr.bf16.mxu0 0
        %819 = vmatpush1.bf16.msra.mxu0 0
        %820 = vmatprep.subr.bf16.mxu0 0
        %821 = vmatpush1.bf16.msra.mxu0 0
        %822 = vmatprep.subr.bf16.mxu0 0
        %823 = vmatpush1.bf16.msra.mxu0 0
        %824 = vmatprep.subr.bf16.mxu0 0
        %825 = vmatpush1.bf16.msra.mxu0 0
        %826 = vmatprep.subr.bf16.mxu0 0
        %827 = vmatpush1.bf16.msra.mxu0 0
        %828 = vmatprep.subr.bf16.mxu0 0
        %829 = vmatpush1.bf16.msra.mxu0 0
        %830 = vmatprep.subr.bf16.mxu0 0
        %831 = vmatpush1.bf16.msra.mxu0 0
        %832 = vmatprep.subr.bf16.mxu0 0
        %833 = vmatpush1.bf16.msra.mxu0 0
        %834 = vmatprep.subr.bf16.mxu0 0
        %835 = vmatpush1.bf16.msra.mxu0 0
        %836 = vmatprep.mubr.bf16.mxu0 0
        %837 = vmatmul.mubr.bf16.gmra.mrb[0].mxu0 %v799
        %v838 = vpop.f32.mrb[0].mxu0
        %v839 = vadd.f32 %v770, %v838
        %v840 = vpop.f32.mrb[0].mxu0
        %v841 = vpop.f32.mrb[0].mxu0
        %v842 = vadd.f32 %v775, %v841
        %v843 = vpop.f32.mrb[0].mxu0
        %844 = vmatprep.mubr.bf16.mxu0 0
        %845 = vmatmul.mubr.bf16.gmra.mrb[0].mxu0 %v802
        %v846 = vpop.f32.mrb[0].mxu0
        %v847 = vadd.f32 %v780, %v846
        %v848 = vpop.f32.mrb[0].mxu0
        %v849 = vpop.f32.mrb[0].mxu0
        %v850 = vadd.f32 %v785, %v849
        %v851 = vpop.f32.mrb[0].mxu0
        %852 = vdwg.mxu0
        %v853 = vmax.f32 %v839, 0.0
        %v854 = vmax.f32 %v842, 0.0
        %v855 = vmax.f32 %v847, 0.0
        %v856 = vmax.f32 %v850, 0.0
        %v857 = vld [vmem:[#allocation12] sm:$0xff]
        %v858 = vld [vmem:[#allocation12 + $0x8] sm:$0xff]
        %v859 = vld [vmem:[#allocation12 + $0x10] sm:$0xff]
        %v860 = vld [vmem:[#allocation12 + $0x18] sm:$0xff]
        %862 = vset.pattern.permute.xlu0 0
        %863 = vperm.xlu0 %862, %v857
        %v864 = vpop.permute.xlu0 %863
        %867 = vset.pattern.permute.xlu0 0
        %868 = vperm.xlu0 %867, %v858
        %v869 = vpop.permute.xlu0 %868
        %872 = vset.pattern.permute.xlu0 0
        %873 = vperm.xlu0 %872, %v859
        %v874 = vpop.permute.xlu0 %873
        %877 = vset.pattern.permute.xlu0 0
        %878 = vperm.xlu0 %877, %v860
        %v879 = vpop.permute.xlu0 %878
        %v881 = vmul.f32 %v853, %v864
        %v882 = vmul.f32 %v854, %v869
        %v883 = vmul.f32 %v855, %v874
        %v884 = vmul.f32 %v856, %v879
        %v885 = vld [vmem:[#allocation13] sm:$0xff]
        %v886 = vld [vmem:[#allocation13 + $0x8] sm:$0xff]
        %v887 = vld [vmem:[#allocation13 + $0x10] sm:$0xff]
        %v888 = vld [vmem:[#allocation13 + $0x18] sm:$0xff]
        %890 = vset.pattern.permute.xlu0 0
        %891 = vperm.xlu0 %890, %v885
        %v892 = vpop.permute.xlu0 %891
        %895 = vset.pattern.permute.xlu0 0
        %896 = vperm.xlu0 %895, %v886
        %v897 = vpop.permute.xlu0 %896
        %900 = vset.pattern.permute.xlu0 0
        %901 = vperm.xlu0 %900, %v887
        %v902 = vpop.permute.xlu0 %901
        %905 = vset.pattern.permute.xlu0 0
        %906 = vperm.xlu0 %905, %v888
        %v907 = vpop.permute.xlu0 %906
        %v909 = vadd.f32 %v881, %v892
        %v910 = vadd.f32 %v882, %v897
        %v911 = vadd.f32 %v883, %v902
        %v912 = vadd.f32 %v884, %v907
        %v913 = vtanh.pop %v909
        %v914 = vtanh.pop %v910
        %v915 = vtanh.pop %v911
        %v916 = vtanh.pop %v912
        %v917 = vld [vmem:[#allocation15] sm:$0xf]
        %v918 = vld [vmem:[#allocation15 + $0x4] sm:$0xf]
        %v919 = vpack.c.bf16 %v914, %v913
        %v920 = vpack.c.bf16 %v916, %v915
        %v921 = vld [vmem:[#allocation16] sm:$0xff]
        %v922 = vld [vmem:[#allocation16 + $0x8] sm:$0xff]
        %924 = vset.pattern.permute.xlu0 0
        %925 = vperm.xlu0 %924, %v921
        %v926 = vpop.permute.xlu0 %925
        %929 = vset.pattern.permute.xlu0 0
        %930 = vperm.xlu0 %929, %v922
        %v931 = vpop.permute.xlu0 %930
        %v935 = vunpack.c.l.b16 %v917
        %v936 = vunpack.c.l.b16 %v918
        %v937 = vpack.c.b16 %v936, %v935
        %v939 = vsel %vm707, %v937, 0
        %941 = vmatprep.subr.bf16.mxu0 0
        %942 = vmatpush1.bf16.msra.mxu0 %v919
        %943 = vmatprep.subr.bf16.mxu0 0
        %944 = vmatpush1.bf16.msra.mxu0 %v920
        %945 = vmatprep.subr.bf16.mxu0 0
        %946 = vmatpush1.bf16.msra.mxu0 0
        %947 = vmatprep.subr.bf16.mxu0 0
        %948 = vmatpush1.bf16.msra.mxu0 0
        %949 = vmatprep.subr.bf16.mxu0 0
        %950 = vmatpush1.bf16.msra.mxu0 0
        %951 = vmatprep.subr.bf16.mxu0 0
        %952 = vmatpush1.bf16.msra.mxu0 0
        %953 = vmatprep.subr.bf16.mxu0 0
        %954 = vmatpush1.bf16.msra.mxu0 0
        %955 = vmatprep.subr.bf16.mxu0 0
        %956 = vmatpush1.bf16.msra.mxu0 0
        %957 = vmatprep.subr.bf16.mxu0 0
        %958 = vmatpush1.bf16.msra.mxu0 0
        %959 = vmatprep.subr.bf16.mxu0 0
        %960 = vmatpush1.bf16.msra.mxu0 0
        %961 = vmatprep.subr.bf16.mxu0 0
        %962 = vmatpush1.bf16.msra.mxu0 0
        %963 = vmatprep.subr.bf16.mxu0 0
        %964 = vmatpush1.bf16.msra.mxu0 0
        %965 = vmatprep.subr.bf16.mxu0 0
        %966 = vmatpush1.bf16.msra.mxu0 0
        %967 = vmatprep.subr.bf16.mxu0 0
        %968 = vmatpush1.bf16.msra.mxu0 0
        %969 = vmatprep.subr.bf16.mxu0 0
        %970 = vmatpush1.bf16.msra.mxu0 0
        %971 = vmatprep.subr.bf16.mxu0 0
        %972 = vmatpush1.bf16.msra.mxu0 0
        %973 = vmatprep.mubr.bf16.mxu0 0
        %974 = vmatmul.mubr.bf16.gmra.mrb[0].mxu0 %v939
        %v975 = vpop.f32.mrb[0].mxu0
        %v976 = vadd.f32 %v926, %v975
        %v977 = vpop.f32.mrb[0].mxu0
        %v978 = vpop.f32.mrb[0].mxu0
        %v979 = vadd.f32 %v931, %v978
        %v980 = vpop.f32.mrb[0].mxu0
        %981 = vdwg.mxu0
        %v982 = vsel %vm443, 1, 0
        %vm983 = vcmp.eq.s32.totalorder %v982, 1
        %v984 = vsel %vm983, %v976, -inf
        %v985 = vsel %vm983, %v979, -inf
        %986 = vmax.xlane.f32.xlu0 %v984
        %v987 = vpop.xlane.xlu0 %986
        %988 = vmax.xlane.f32.xlu0 %v985
        %v989 = vpop.xlane.xlu0 %988
        %v990 = vmax.f32 %v987, -1e+30
        %v991 = vmax.f32 %v989, -1e+30
        %v992 = vsub.f32 %v984, %v990
        %v993 = vsub.f32 %v985, %v991
        %v994 = vmul.f32 %v992, 1.442695
        %v995 = vpow.pop %v994
        %v996 = vmul.f32 %v993, 1.442695
        %v997 = vpow.pop %v996
        %998 = vadd.xlane.f32.xlu0 %v995
        %v999 = vpop.xlane.xlu0 %998
        %1000 = vadd.xlane.f32.xlu0 %v997
        %v1001 = vpop.xlane.xlu0 %1000
        %v1002 = vmax.f32 %v999, 1e-30
        %v1003 = vmax.f32 %v1001, 1e-30
        %v1004 = vrcp.pop %v1002
        %v1005 = vrcp.pop %v1003
        %v1006 = vmul.f32 %v995, %v432
        %v1007 = vmul.f32 %v997, %v433
        %1008 = vadd.xlane.f32.xlu0 %v1006
        %v1009 = vpop.xlane.xlu0 %1008
        %1010 = vadd.xlane.f32.xlu0 %v1007
        %v1011 = vpop.xlane.xlu0 %1010
        %v1012 = vmul.f32 %v1009, %v1004
        %v1013 = vmul.f32 %v1011, %v1005
        %v1014 = vmul.f32 %v1006, %v432
        %v1015 = vmul.f32 %v1007, %v433
        %1016 = vadd.xlane.f32.xlu0 %v1014
        %v1017 = vpop.xlane.xlu0 %1016
        %1018 = vadd.xlane.f32.xlu0 %v1015
        %v1019 = vpop.xlane.xlu0 %1018
        %v1020 = vmul.f32 %v1017, %v1004
        %v1021 = vmul.f32 %v1019, %v1005
        %v1022 = vmul.f32 %v1012, %v1012
        %v1023 = vmul.f32 %v1013, %v1013
        %v1024 = vsub.f32 %v1020, %v1022
        %v1025 = vsub.f32 %v1021, %v1023
        %v1026 = vmax.f32 %v1024, 1e-10
        %v1027 = vmax.f32 %v1025, 1e-10
        %v1028 = vrsqrt.pop %v1026
        %v1029 = vmul.f32 %v1026, %v1028
        %vm1030 = vcmp.eq.f32.partialorder %v1026, inf
        %v1031 = vsel %vm1030, %v1026, %v1029
        %vm1032 = vcmp.eq.f32.partialorder %v1026, 0.0
        %v1033 = vand.u32 %v1026, 2147483648
        %v1034 = vsel %vm1032, %v1033, %v1031
        %v1035 = vrsqrt.pop %v1027
        %v1036 = vmul.f32 %v1027, %v1035
        %vm1037 = vcmp.eq.f32.partialorder %v1027, inf
        %v1038 = vsel %vm1037, %v1027, %v1036
        %vm1039 = vcmp.eq.f32.partialorder %v1027, 0.0
        %v1040 = vand.u32 %v1027, 2147483648
        %v1041 = vsel %vm1039, %v1040, %v1038
        %1042 = vxpose.xlu0.b32.start [1/16] %v1012, 128
        %1043 = vxpose.xlu0.b32.cont [2/16] %v1013, 128
        %1044 = vxpose.xlu0.b32.cont [3/16] %v1034, 128
        %1045 = vxpose.xlu0.b32.cont [4/16] %v1041, 128
        %1046 = vxpose.xlu0.b32.cont [5/16] 0.0, 128
        %1047 = vxpose.xlu0.b32.cont [6/16] 0.0, 128
        %1048 = vxpose.xlu0.b32.cont [7/16] 0.0, 128
        %1049 = vxpose.xlu0.b32.cont [8/16] 0.0, 128
        %1050 = vxpose.xlu0.b32.cont [9/16] 0.0, 128
        %1051 = vxpose.xlu0.b32.cont [10/16] 0.0, 128
        %1052 = vxpose.xlu0.b32.cont [11/16] 0.0, 128
        %1053 = vxpose.xlu0.b32.cont [12/16] 0.0, 128
        %1054 = vxpose.xlu0.b32.cont [13/16] 0.0, 128
        %1055 = vxpose.xlu0.b32.cont [14/16] 0.0, 128
        %1056 = vxpose.xlu0.b32.cont [15/16] 0.0, 128
        %1057 = vxpose.xlu0.b32.end [16/16] 0.0, 128
        %v1058 = vpop.trf.xlu0
        %v1059 = vpop.trf.xlu0
        %v1060 = vpop.trf.xlu0
        %v1061 = vpop.trf.xlu0
        %v1062 = vpop.trf.xlu0
        %v1063 = vpop.trf.xlu0
        %v1064 = vpop.trf.xlu0
        %v1065 = vpop.trf.xlu0
        %v1066 = vpop.trf.xlu0
        %v1067 = vpop.trf.xlu0
        %v1068 = vpop.trf.xlu0
        %v1069 = vpop.trf.xlu0
        %v1070 = vpop.trf.xlu0
        %v1071 = vpop.trf.xlu0
        %v1072 = vpop.trf.xlu0
        %v1073 = vpop.trf.xlu0
        %vm1074 = vcmask 253952
        %1075 = vst.msk [vmem:[%s429] sm:$0x1] %vm1074, %v1058
        %s1076 = sand.u32 %s215, 1
        %s1077 = scalar_lea.sflag [#allocation6], %s1076
        %s1078 = sand.u32 %s215, 1
        %s1079 = scalar_lea.vmem [#allocation18], %s1078
        // Predicated region
        $region85: #{attentive_pool.1} parent=51 // pred_check
          %p1080 = pneg %p225
        $region86: #{attentive_pool.1} parent=51 // pred_check_branch
          %1082 = sbr.rel (%p1080) target = $region88
        $region87: #{attentive_pool.1} parent=51 // pred_region
          %s1084 = ssub.s32 16, 16
          %1085 = vsyncadd %s1077, %s1084
          %s1086 = smul.addr %s34, 16
          %s1087 = scalar_lea.hbm %s9, %s1086
          %s1089 = sshll.u32 %s1079, 4
          %s1090 = int_to_ptr.vmem [resolvable:$true] %s1089
          %1092 = dma.vmem_to_hbm [thread:$0]  %s1090, 16, %s1087, %s1077
        $region88: #{attentive_pool.1} parent=51 // pred_fallthru
          _
      $region52: #{attentive_pool.1} parent=5 // pred_fallthru
        _
      %p1093 = scmp.le.s32.totalorder 2, %s29
      // Predicated region
      $region89: #{attentive_pool.1} parent=5 // pred_check
        %p1094 = pneg %p1093
      $region90: #{attentive_pool.1} parent=5 // pred_check_branch
        %1096 = sbr.rel (%p1094) target = $region92
      $region91: #{attentive_pool.1} parent=5 // pred_region
        %s1097 = ssub.s32 %s29, 2
        // Predicated region
        $region93: #{attentive_pool.1} parent=91 // pred_check
          %p1098 = pneg %p231
        $region94: #{attentive_pool.1} parent=91 // pred_check_branch
          %1100 = sbr.rel (%p1098) target = $region96
        $region95: #{attentive_pool.1} parent=91 // pred_region
          %s1101 = sand.u32 %s216, 1
          %s1102 = scalar_lea.sflag [#allocation6], %s1101
          %s1103 = sand.u32 %s216, 1
          %s1104 = scalar_lea.vmem [#allocation18], %s1103
          %1105 = dma.done %s1102, 16
        $region96: #{attentive_pool.1} parent=91 // pred_fallthru
          _
      $region92: #{attentive_pool.1} parent=5 // pred_fallthru
        _
    $region6: #{attentive_pool.1} parent=1 // loop_footer
      %s33 = sadd.s32 1, %s29
    $region7: #{attentive_pool.1} parent=1 // loop_footer_branch
      %28 = sbr.rel target = $region3
    $region8: #{attentive_pool.1} parent=1 // loop_exit
      _
    %1106 = vsyncpa [#allocation5], 1
    %s1107 = scalar_lea.sflag [#allocation5], 1
    %1108 = vsyncpa %s1107, 1
    %1109 = vsyncpa [#allocation8], 1
    %1110 = vsyncpa [#allocation11], 1
    %1111 = vsyncpa [#allocation14], 1
    %1112 = vsyncpa [#allocation17], 1
    %1113 = vsyncpa [#allocation6], 1
    %s1114 = scalar_lea.sflag [#allocation6], 1
    %1115 = vsyncpa %s1114, 1

</llo_original>
